<compile_context>
chip_gen: v7x
topology: tpu7x:2x2x1
jax: 0.10.0
libtpu: 0.0.40
codegen_flags: <defaults>
</compile_context>

<pallas_src>
import functools

import jax
import jax.numpy as jnp
from jax.experimental import pallas as pl
from jax.experimental.pallas import tpu as pltpu


# ----------------------------- Pallas kernel --------------------------------

def _rmsnorm_kernel(x_ref, w_ref, o_ref, *, eps):
    # x_ref: (tm, H) block of rows; w_ref: (1, H) shared weight; o_ref: (tm, H)
    x = x_ref[...].astype(jnp.float32)
    var = jnp.mean(x * x, axis=-1, keepdims=True)           # (tm, 1) row reduce
    inv = jax.lax.rsqrt(var + eps)                           # EUP slot
    w = w_ref[...].astype(jnp.float32)                       # (1, H), broadcast
    o_ref[...] = (x * inv * w).astype(o_ref.dtype)


# ------------------------------ tiling policy ---------------------------------

def _vmem_budget_bytes():
    """Headroomed per-core VMEM budget for this chip generation."""
    try:
        cap = int(pltpu.get_tpu_info().vmem_capacity_bytes)
    except Exception:
        cap = 64 * 1024 * 1024  # conservative fallback (v7x per-TC VMEM)
    # Leave ~20% headroom for compiler-internal scratch / semaphores.
    return int(cap * 0.8)


def _choose_block_rows(M, H, itemsize, vmem_budget):
    """Largest legal rows-per-block that fits the VMEM budget.

    Per-row live bytes ~ double-buffered input tile + double-buffered output
    tile (input dtype) + ~2 f32-sized temporaries for the compute copy.
    """
    per_row = H * (2 * itemsize + 2 * itemsize + 2 * 4)
    tm = max(1, vmem_budget // per_row)

    # dtype-aware sublane multiple: f32 -> 8, bf16 -> 16, int8/fp8 -> 32.
    sub = max(8, 32 // max(1, itemsize))

    if tm >= M:
        tm = M                              # full-extent block is always legal
    else:
        tm = max(sub, (tm // sub) * sub)

    # Avoid the degenerate grid=(1,) (or near-degenerate) path for non-trivial
    # inputs: keep >= ~4 grid steps so the pipeline double-buffers and both
    # TensorCores get work under dimension_semantics=("parallel",).
    total_bytes = M * H * itemsize
    if total_bytes > (4 << 20):
        cap = ((pl.cdiv(M, 4) + sub - 1) // sub) * sub
        tm = min(tm, max(sub, cap))

    return max(1, min(tm, M))


# ------------------------------ wrapper ----------------------------------------

def rmsnorm(hidden_states, weight, eps=1e-6):
    """hidden_states: (..., H); weight: (H,). Returns same shape/dtype."""
    orig_shape = hidden_states.shape
    H = orig_shape[-1]
    x2d = hidden_states.reshape(-1, H)
    M = x2d.shape[0]

    itemsize = jnp.dtype(hidden_states.dtype).itemsize
    vmem_budget = _vmem_budget_bytes()
    tm = _choose_block_rows(M, H, itemsize, vmem_budget)
    grid = (pl.cdiv(M, tm),)
    w2d = weight.reshape(1, H)

    out = pl.pallas_call(
        functools.partial(_rmsnorm_kernel, eps=float(eps)),
        out_shape=jax.ShapeDtypeStruct((M, H), hidden_states.dtype),
        grid=grid,
        in_specs=[
            pl.BlockSpec((tm, H), lambda i: (i, 0)),   # rows tile
            pl.BlockSpec((1, H), lambda i: (0, 0)),    # weight, reused each step
        ],
        out_specs=pl.BlockSpec((tm, H), lambda i: (i, 0)),
        compiler_params=pltpu.CompilerParams(
            dimension_semantics=("parallel",),
            vmem_limit_bytes=vmem_budget,
        ),
    )(x2d, w2d)
    return out.reshape(orig_shape)


# ------------------------------ reference ------------------------------------

def reference_rmsnorm(hidden_states, weight, eps=1e-6):
    x = hidden_states.astype(jnp.float32)
    var = jnp.mean(x * x, axis=-1, keepdims=True)
    x = x * jax.lax.rsqrt(var + eps)
    return (weight.astype(jnp.float32) * x).astype(hidden_states.dtype)


# -------------------------------- main ----------------------------------------

if __name__ == "__main__":
    eps = 1e-6
    key = jax.random.PRNGKey(0)
    k1, k2, k3 = jax.random.split(key, 3)

    # --- small f32 case (single full-extent block path) ---
    batch, seq, hidden = 2, 16, 128
    hidden_states = jax.random.normal(k1, (batch, seq, hidden), jnp.float32)
    weight = 1.0 + 0.1 * jax.random.normal(k2, (hidden,), jnp.float32)

    out = jax.block_until_ready(rmsnorm(hidden_states, weight, eps))
    ref = reference_rmsnorm(hidden_states, weight, eps)
    assert out.shape == hidden_states.shape
    assert out.dtype == hidden_states.dtype
    assert jnp.allclose(out, ref, rtol=1e-5, atol=1e-5), "f32 mismatch vs reference"

    # --- bf16 case (compute still in f32, cast back — like the PyTorch module) ---
    hs_bf16 = hidden_states.astype(jnp.bfloat16)
    w_bf16 = weight.astype(jnp.bfloat16)
    out_bf16 = jax.block_until_ready(rmsnorm(hs_bf16, w_bf16, eps))
    ref_bf16 = reference_rmsnorm(hs_bf16, w_bf16, eps)
    assert out_bf16.dtype == jnp.bfloat16
    assert jnp.allclose(out_bf16.astype(jnp.float32),
                        ref_bf16.astype(jnp.float32),
                        rtol=2e-2, atol=2e-2), "bf16 mismatch vs reference"

    # --- moderately sized f32 case to exercise the multi-step tiled grid ---
    hs_big = jax.random.normal(k3, (4, 512, 1024), jnp.float32)   # 8 MiB total
    w_big = jnp.ones((1024,), jnp.float32)
    out_big = jax.block_until_ready(rmsnorm(hs_big, w_big, eps))
    ref_big = reference_rmsnorm(hs_big, w_big, eps)
    assert jnp.allclose(out_big, ref_big, rtol=1e-5, atol=1e-5), "tiled f32 mismatch"

    print("KERNEL_OK")
</pallas_src>

<mosaic_0001>
module attributes {stable_mosaic.version = 11 : i64} {
  func.func @_rmsnorm_kernel(%arg0: i32, %arg1: memref<32x128xf32, #tpu.memory_space<vmem>>, %arg2: memref<1x128xf32, #tpu.memory_space<vmem>>, %arg3: memref<32x128xf32, #tpu.memory_space<vmem>>) attributes {dimension_semantics = [#tpu.dimension_semantics<parallel>], iteration_bounds = array<i64: 1>, scalar_prefetch = 0 : i64, scratch_operands = 0 : i64, tpu.core_type = #tpu.core_type<tc>, window_params = [{transform_indices = @transform_0, window_bounds = array<i64: 32, 128>}, {pipeline_mode = #tpu.pipeline_mode<synchronous>, transform_indices = @transform_1, window_bounds = array<i64: 1, 128>}, {transform_indices = @transform_2, window_bounds = array<i64: 32, 128>}]} {
    %c0 = arith.constant 0 : index
    %c0_0 = arith.constant 0 : index
    %0 = vector.load %arg1[%c0, %c0_0] : memref<32x128xf32, #tpu.memory_space<vmem>>, vector<32x128xf32>
    %1 = arith.mulf %0, %0 : vector<32x128xf32>
    %cst = arith.constant dense<0.000000e+00> : vector<32xf32>
    %2 = vector.multi_reduction <add>, %1, %cst [1] : vector<32x128xf32> to vector<32xf32>
    %3 = vector.shape_cast %2 : vector<32xf32> to vector<32x1xf32>
    %cst_1 = arith.constant 1.280000e+02 : f32
    %4 = vector.broadcast %cst_1 : f32 to vector<32x1xf32>
    %5 = arith.divf %3, %4 : vector<32x1xf32>
    %cst_2 = arith.constant 9.99999997E-7 : f32
    %6 = vector.broadcast %cst_2 : f32 to vector<32x1xf32>
    %7 = arith.addf %5, %6 : vector<32x1xf32>
    %8 = math.rsqrt %7 : vector<32x1xf32>
    %c0_3 = arith.constant 0 : index
    %c0_4 = arith.constant 0 : index
    %9 = vector.load %arg2[%c0_3, %c0_4] : memref<1x128xf32, #tpu.memory_space<vmem>>, vector<1x128xf32>
    %10 = vector.broadcast %8 : vector<32x1xf32> to vector<32x128xf32>
    %11 = arith.mulf %0, %10 : vector<32x128xf32>
    %12 = vector.broadcast %9 : vector<1x128xf32> to vector<32x128xf32>
    %13 = arith.mulf %11, %12 : vector<32x128xf32>
    %c0_5 = arith.constant 0 : index
    %c0_6 = arith.constant 0 : index
    %14 = vector.load %arg3[%c0_5, %c0_6] : memref<32x128xf32, #tpu.memory_space<vmem>>, vector<32x128xf32>
    tpu.vector_store %arg3[%c0_5, %c0_6], %13 {strides = array<i32>} : memref<32x128xf32, #tpu.memory_space<vmem>>, vector<32x128xf32>,
    return
  }
  func.func @transform_0(%arg0: i32) -> (i32, i32) {
    %c0_i32 = arith.constant 0 : i32
    %c0_i32_0 = arith.constant 0 : i32
    return %arg0, %c0_i32 : i32, i32
  }
  func.func @transform_1(%arg0: i32) -> (i32, i32) {
    %c0_i32 = arith.constant 0 : i32
    %c0_i32_0 = arith.constant 0 : i32
    %c0_i32_1 = arith.constant 0 : i32
    return %c0_i32, %c0_i32_0 : i32, i32
  }
  func.func @transform_2(%arg0: i32) -> (i32, i32) {
    %c0_i32 = arith.constant 0 : i32
    %c0_i32_0 = arith.constant 0 : i32
    return %arg0, %c0_i32 : i32, i32
  }
}

</mosaic_0001>

<llo_original>
// kernel: tpu_custom_call.1
$region0: #{tpu_custom_call.1}
  #allocation0 [shape = 'u32[]', space=smem, size = 0x4, offset = 0x4, fixed_abs, tag = 'smem constant byte address 0x4 - core index']
  #allocation1 [shape = 'u32[144,128]{1,0:T(1,128)}', space=vmem, size = 0x12000, scoped, tag = 'internal scratch']
  %s0 = inlined_call_operand.hbm [shape: f32[32,128], index: 0, kind: input, shape index: {}]
  %s1 = inlined_call_operand.vmem [shape: f32[1,128], index: 1, kind: input, shape index: {}]
  %s2 = inlined_call_operand.hbm [shape: f32[32,128], index: 2, kind: output, shape index: {}]
  %s3 = sld [smem:[#allocation0]]
  $region22: #{tpu_custom_call.1} parent=0
    _
  %s5 = ssub.s32 1, %s3
  %s6 = scalar_select 0, %s5, %s3
  $region1: #{tpu_custom_call.1} parent=0
    #allocation2 [shape = 'u8[16384]{0}', space=vmem, size = 0x4000, scoped, tag = 'input window, operand 0, single buffered']
    #allocation3 [shape = 's32[1]{0}', space=sflag, size = 0x4, scoped, tag = 'scoped memory for tpu_custom_call.1']
    #allocation4 [shape = 's32[1]{0}', space=sflag, size = 0x4, scoped, tag = 'scoped memory for tpu_custom_call.1']
    #allocation5 [shape = 'u8[16384]{0}', space=vmem, size = 0x4000, scoped, tag = 'output window, operand 0, single buffered']
    %7 = vsyncpa [#allocation3], 0
    %8 = vsyncpa [#allocation4], 0
    // Predicated region
    $region2: #{tpu_custom_call.1} parent=1 // pred_check
      _
    $region3: #{tpu_custom_call.1} parent=1 // pred_check_branch
      %10 = sbr.rel (0) target = $region5
    $region4: #{tpu_custom_call.1} parent=1 // pred_region
      %s12 = ssub.s32 512, 512
      %13 = vsyncadd [#allocation3], %s12
      %s14 = sshll.u32 [#allocation2], 4
      %s15 = int_to_ptr.vmem [resolvable:$true] %s14
      %20 = dma.hbm_to_vmem [thread:$0]  %s0, 512, %s15, [#allocation3], 128, 128, 8
    $region5: #{tpu_custom_call.1} parent=1 // pred_fallthru
      _
    // Predicated region
    $region6: #{tpu_custom_call.1} parent=1 // pred_check
      _
    $region7: #{tpu_custom_call.1} parent=1 // pred_check_branch
      %22 = sbr.rel (0) target = $region9
    $region8: #{tpu_custom_call.1} parent=1 // pred_region
      _
    $region9: #{tpu_custom_call.1} parent=1 // pred_fallthru
      _
    // Predicated region
    $region10: #{tpu_custom_call.1} parent=1 // pred_check
      _
    $region11: #{tpu_custom_call.1} parent=1 // pred_check_branch
      %24 = sbr.rel (0) target = $region13
    $region12: #{tpu_custom_call.1} parent=1 // pred_region
      %25 = dma.done [#allocation3], 512
    $region13: #{tpu_custom_call.1} parent=1 // pred_fallthru
      _
    %v26 = vld [vmem:[#allocation2] sm:$0xff]
    %v27 = vld [vmem:[#allocation2 + $0x8] sm:$0xff]
    %v28 = vld [vmem:[#allocation2 + $0x10] sm:$0xff]
    %v29 = vld [vmem:[#allocation2 + $0x18] sm:$0xff]
    %v30 = vmul.f32 %v26, %v26
    %v31 = vmul.f32 %v27, %v27
    %v32 = vmul.f32 %v28, %v28
    %v33 = vmul.f32 %v29, %v29
    %34 = vadd.xlane.f32.xlu0 %v30
    %v35 = vpop.xlane.xlu0 %34
    %36 = vadd.xlane.f32.xlu0 %v31
    %v37 = vpop.xlane.xlu0 %36
    %38 = vadd.xlane.f32.xlu0 %v32
    %v39 = vpop.xlane.xlu0 %38
    %40 = vadd.xlane.f32.xlu0 %v33
    %v41 = vpop.xlane.xlu0 %40
    %v42 = vrcp.pop 128.0
    %v43 = vmul.f32 %v35, %v42
    %v44 = vmul.f32 %v37, %v42
    %v45 = vmul.f32 %v39, %v42
    %v46 = vmul.f32 %v41, %v42
    %v47 = vadd.f32 %v43, 1e-06
    %v48 = vadd.f32 %v44, 1e-06
    %v49 = vadd.f32 %v45, 1e-06
    %v50 = vadd.f32 %v46, 1e-06
    %v51 = vrsqrt.pop %v47
    %v52 = vrsqrt.pop %v48
    %v53 = vrsqrt.pop %v49
    %v54 = vrsqrt.pop %v50
    %v55 = vld [vmem:[%s1] sm:$0x1]
    %v56 = vmul.f32 %v26, %v51
    %v57 = vmul.f32 %v27, %v52
    %v58 = vmul.f32 %v28, %v53
    %v59 = vmul.f32 %v29, %v54
    %v61 = vlaneseq
    %v62 = vshrl.u32 %v61, 7
    %v63 = vsub.s32 0, %v62
    %v64 = vrot.slane %v55, %v63
    %v66 = vmul.f32 %v56, %v64
    %v67 = vmul.f32 %v57, %v64
    %v68 = vmul.f32 %v58, %v64
    %v69 = vmul.f32 %v59, %v64
    %70 = vst [vmem:[#allocation5] sm:$0xff] %v66
    %71 = vst [vmem:[#allocation5 + $0x8] sm:$0xff] %v67
    %72 = vst [vmem:[#allocation5 + $0x10] sm:$0xff] %v68
    %73 = vst [vmem:[#allocation5 + $0x18] sm:$0xff] %v69
    // Predicated region
    $region14: #{tpu_custom_call.1} parent=1 // pred_check
      _
    $region15: #{tpu_custom_call.1} parent=1 // pred_check_branch
      %75 = sbr.rel (0) target = $region17
    $region16: #{tpu_custom_call.1} parent=1 // pred_region
      %s77 = ssub.s32 512, 512
      %78 = vsyncadd [#allocation4], %s77
      %s79 = sshll.u32 [#allocation5], 4
      %s80 = int_to_ptr.vmem [resolvable:$true] %s79
      %85 = dma.vmem_to_hbm [thread:$0]  %s80, 512, %s2, [#allocation4], 128, 128, 8
    $region17: #{tpu_custom_call.1} parent=1 // pred_fallthru
      _
    // Predicated region
    $region18: #{tpu_custom_call.1} parent=1 // pred_check
      _
    $region19: #{tpu_custom_call.1} parent=1 // pred_check_branch
      %87 = sbr.rel (0) target = $region21
    $region20: #{tpu_custom_call.1} parent=1 // pred_region
      %88 = dma.done [#allocation4], 512
    $region21: #{tpu_custom_call.1} parent=1 // pred_fallthru
      _
    %89 = vsyncpa [#allocation3], 1
    %90 = vsyncpa [#allocation4], 1

</llo_original>
